<compile_context>
chip_gen: v6e
topology: v6e:2x2x1
jax: 0.10.0
libtpu: 0.0.40
codegen_flags: <defaults>
</compile_context>

<pallas_src>
import functools

import jax
import jax.numpy as jnp
from jax.experimental import pallas as pl
from jax.experimental.pallas import tpu as pltpu

_MIB = 1024 * 1024


def _gtu_kernel(v_ref, qp_ref, w_ref, out_ref, *, n_y, compute_dtype):
    # v_ref:   (tb, tk, Din)      activation tile, native dtype (cast in-VMEM below)
    # qp_ref:  (tb, 1, 2*n_y)     per-batch additive term: q-projection + biases (f32)
    # w_ref:   (Din, 2*n_y)       fused (block-diagonal) weight, columns [Y... | G...]
    # out_ref: (tb, tk, n_y)      lane-dense output (n_y >= 128 whenever fold > 1)
    w = w_ref[...]
    for bi in range(out_ref.shape[0]):                     # small, static, unrolled
        v = v_ref[bi].astype(compute_dtype)                # cast in VMEM, not in HBM
        # One fused MXU matmul -> f32 accumulator, full-lane [Y | G] layout.
        z = jnp.dot(v, w, preferred_element_type=jnp.float32) + qp_ref[bi]
        y = jnp.tanh(z[:, :n_y])                           # vreg-aligned slice when fold>1
        g = jax.nn.sigmoid(z[:, n_y:])
        # NOTE(v5e): this f32 elementwise epilogue is the likely vst-slot hotspot there;
        # it is already fused into a single product + cast + full-lane store.
        out_ref[bi] = (y * g).astype(out_ref.dtype)


def _choose_tiles(B, Kf, vmem_row, dma_row, rows_hint):
    """Pick (batch rows per step, folded-K rows per step)."""
    budget = 26 * _MIB          # per-step VMEM working set (io double-buffers + f32 temps)
    min_step = 1 * _MIB         # amortize the ~0.35us fixed per-grid-step overhead
    rows_hint = max(8, rows_hint)

    if Kf <= rows_hint:
        tk = Kf                                  # single block = full (folded) K axis
    else:
        tk = max(8, (rows_hint // 8) * 8)        # partial edge block ok: multiple of 8
    while tk > 8 and tk * vmem_row > budget:
        tk = max(8, ((tk // 2) // 8) * 8)

    # If the whole problem is one big block and B == 1, split K so both v7x
    # TensorCores get a grid step.
    if B == 1 and tk == Kf and Kf >= 16 and Kf * dma_row >= 2 * min_step:
        tk = max(8, (((Kf + 1) // 2 + 7) // 8) * 8)

    # Pack several batch rows per step when each K step is tiny.
    tb = 1
    if tk == Kf:
        while (tb < min(B, 8)
               and (tb + 1) * tk * vmem_row <= budget
               and tb * tk * dma_row < min_step):
            tb += 1
    return tb, tk


@functools.partial(jax.jit, static_argnames=("tile_rows", "compute_dtype", "out_dtype"))
def gtu_scoring(v, q, w1_eff, b1, w2_eff, b2, *, tile_rows=4096,
                compute_dtype=jnp.float32, out_dtype=None):
    """v: [B, K, v_dim], q: [B, q_dim]. Returns s: [B, K, score_dim]."""
    B, K, v_dim = v.shape
    S = w1_eff.shape[0]
    od = jnp.dtype(v.dtype) if out_dtype is None else jnp.dtype(out_dtype)

    # ---- Split weights into v-rows / q-rows; fold q-rows + biases into a per-batch term.
    w1_v, w1_q = w1_eff[:, :v_dim], w1_eff[:, v_dim:]      # [S, v_dim], [S, q_dim]
    w2_v, w2_q = w2_eff[:, :v_dim], w2_eff[:, v_dim:]
    qf = q.astype(jnp.float32)
    qp1 = qf @ w1_q.T.astype(jnp.float32) + b1.astype(jnp.float32)   # [B, S]
    qp2 = qf @ w2_q.T.astype(jnp.float32) + b2.astype(jnp.float32)   # [B, S]

    # ---- Lane-dense row folding: pack `fold` consecutive K rows into the lane dim.
    fold = 1
    if S < 128 and 128 % S == 0 and K % (128 // S) == 0:
        fold = 128 // S
    Kf = K // fold
    Din = fold * v_dim
    n_y = fold * S

    wy = w1_v.T.astype(jnp.float32)                         # [v_dim, S]
    wg = w2_v.T.astype(jnp.float32)
    if fold == 1:
        w_big = jnp.concatenate([wy, wg], axis=-1)          # [v_dim, 2S]
    else:
        eye = jnp.eye(fold, dtype=jnp.float32)
        # Block-diagonal so each packed row hits its own column group; columns ordered
        # [Y_0..Y_{fold-1} | G_0..G_{fold-1}] -> tanh/sigmoid act on full-lane slices.
        w_big = jnp.concatenate([jnp.kron(eye, wy), jnp.kron(eye, wg)], axis=-1)
    w_big = w_big.astype(compute_dtype)                     # tiny, resident weight

    qp_big = jnp.concatenate([jnp.tile(qp1, (1, fold)),
                              jnp.tile(qp2, (1, fold))], axis=-1)     # [B, 2*n_y] f32
    qp_big = qp_big[:, None, :]                                        # [B, 1, 2*n_y]

    # Free, contiguous reshape of v in HBM (native dtype, no extra pass).
    v2 = v.reshape(B, Kf, Din)

    # ---- Tile selection + VMEM sizing.
    v_isz = jnp.dtype(v.dtype).itemsize
    w_isz = jnp.dtype(compute_dtype).itemsize
    o_isz = od.itemsize
    dma_row = Din * v_isz + n_y * o_isz                                 # HBM bytes / row
    vmem_row = 2 * Din * v_isz + 2 * n_y * o_isz + 3 * (2 * n_y) * 4    # io 2-buf + f32 temps
    tb, tk = _choose_tiles(B, Kf, vmem_row, dma_row, max(8, tile_rows // fold))

    est = (tb * tk * vmem_row
           + 2 * Din * (2 * n_y) * w_isz
           + 2 * tb * (2 * n_y) * 4)
    vmem_limit = int(min(48 * _MIB, max(16 * _MIB, est * 3 // 2 + 2 * _MIB)))

    grid = (pl.cdiv(B, tb), pl.cdiv(Kf, tk))
    out = pl.pallas_call(
        functools.partial(_gtu_kernel, n_y=n_y, compute_dtype=compute_dtype),
        out_shape=jax.ShapeDtypeStruct((B, Kf, n_y), od),
        grid_spec=pltpu.PrefetchScalarGridSpec(
            num_scalar_prefetch=0,
            grid=grid,
            in_specs=[
                pl.BlockSpec((tb, tk, Din), lambda b, i: (b, i, 0)),       # v tile
                pl.BlockSpec((tb, 1, 2 * n_y), lambda b, i: (b, 0, 0)),    # q-proj + bias
                pl.BlockSpec((Din, 2 * n_y), lambda b, i: (0, 0)),         # fused weight
            ],
            out_specs=pl.BlockSpec((tb, tk, n_y), lambda b, i: (b, i, 0)),
        ),
        compiler_params=pltpu.CompilerParams(
            dimension_semantics=("parallel", "parallel"),
            vmem_limit_bytes=vmem_limit,
        ),
    )(v2, qp_big, w_big)

    return out.reshape(B, K, S)                             # free (contiguous) view back


def _weight_norm_effective(weight_v, g_scalar):
    """weight_norm with dim=None (as in the module): W_eff = g * V / ||V||_F, scalar g."""
    norm = jnp.sqrt(jnp.sum(weight_v * weight_v))
    return (g_scalar / norm) * weight_v


def _reference(v, q, w1_eff, b1, w2_eff, b2):
    B, K, _ = v.shape
    q_rep = jnp.broadcast_to(q[:, None, :], (B, K, q.shape[-1]))
    vq = jnp.concatenate([v, q_rep], axis=-1)
    y = jnp.tanh(vq @ w1_eff.T + b1)
    g = jax.nn.sigmoid(vq @ w2_eff.T + b2)
    return y * g


if __name__ == "__main__":
    # Small shapes consistent with the module's forward.
    B, K = 2, 8
    v_dim, q_dim, score_dim = 32, 16, 64
    D = v_dim + q_dim

    key = jax.random.PRNGKey(0)
    kv, kq, kw1, kb1, kw2, kb2 = jax.random.split(key, 6)

    v = jax.random.normal(kv, (B, K, v_dim), dtype=jnp.float32)
    q = jax.random.normal(kq, (B, q_dim), dtype=jnp.float32)

    # nn.Linear shapes: weight [out, in], bias [out].
    bound = 1.0 / jnp.sqrt(jnp.float32(D))
    w1_v = jax.random.uniform(kw1, (score_dim, D), minval=-bound, maxval=bound)
    b1 = jax.random.uniform(kb1, (score_dim,), minval=-bound, maxval=bound)
    w2_v = jax.random.uniform(kw2, (score_dim, D), minval=-bound, maxval=bound)
    b2 = jax.random.uniform(kb2, (score_dim,), minval=-bound, maxval=bound)
    # weight_norm(dim=None): scalar gain (perturbed so the reparameterization matters).
    g1 = jnp.sqrt(jnp.sum(w1_v * w1_v)) * 1.1
    g2 = jnp.sqrt(jnp.sum(w2_v * w2_v)) * 0.9
    w1_eff = _weight_norm_effective(w1_v, g1)
    w2_eff = _weight_norm_effective(w2_v, g2)

    s_ref = _reference(v, q, w1_eff, b1, w2_eff, b2)

    # Default path: f32 compute, native f32 output, lane-dense folded store (fold=2).
    s_f32 = jax.block_until_ready(gtu_scoring(v, q, w1_eff, b1, w2_eff, b2))
    assert s_f32.shape == (B, K, score_dim), s_f32.shape
    assert jnp.allclose(s_f32, s_ref, atol=1e-5, rtol=1e-5), "f32 mismatch vs reference"

    # Fast path (opt-in): bf16 MXU inputs + bf16 output — relaxed tolerance.
    s_bf16 = jax.block_until_ready(
        gtu_scoring(v, q, w1_eff, b1, w2_eff, b2,
                    compute_dtype=jnp.bfloat16, out_dtype=jnp.bfloat16))
    assert s_bf16.shape == (B, K, score_dim), s_bf16.shape
    assert jnp.allclose(s_bf16.astype(jnp.float32), s_ref, atol=2e-2, rtol=2e-2), \
        "bf16 mismatch vs reference"

    # Ragged / non-foldable K (exercises fold=1 fallback + partial-block handling).
    v7 = v[:, :7, :]
    s7 = jax.block_until_ready(gtu_scoring(v7, q, w1_eff, b1, w2_eff, b2))
    s7_ref = _reference(v7, q, w1_eff, b1, w2_eff, b2)
    assert s7.shape == (B, 7, score_dim), s7.shape
    assert jnp.allclose(s7, s7_ref, atol=1e-5, rtol=1e-5), "ragged-K mismatch vs reference"

    print("KERNEL_OK")
</pallas_src>

<mosaic_0001>
module attributes {stable_mosaic.version = 11 : i64} {
  func.func @_gtu_kernel(%arg0: i32, %arg1: i32, %arg2: memref<2x4x64xf32, #tpu.memory_space<vmem>>, %arg3: memref<2x1x256xf32, #tpu.memory_space<vmem>>, %arg4: memref<64x256xf32, #tpu.memory_space<vmem>>, %arg5: memref<2x4x128xf32, #tpu.memory_space<vmem>>) attributes {dimension_semantics = [#tpu.dimension_semantics<parallel>, #tpu.dimension_semantics<parallel>], iteration_bounds = array<i64: 1, 1>, scalar_prefetch = 0 : i64, scratch_operands = 0 : i64, tpu.core_type = #tpu.core_type<tc>, window_params = [{transform_indices = @transform_0, window_bounds = array<i64: 2, 4, 64>}, {transform_indices = @transform_1, window_bounds = array<i64: 2, 1, 256>}, {pipeline_mode = #tpu.pipeline_mode<synchronous>, transform_indices = @transform_2, window_bounds = array<i64: 64, 256>}, {transform_indices = @transform_3, window_bounds = array<i64: 2, 4, 128>}]} {
    %c0 = arith.constant 0 : index
    %c0_0 = arith.constant 0 : index
    %0 = vector.load %arg4[%c0, %c0_0] : memref<64x256xf32, #tpu.memory_space<vmem>>, vector<64x256xf32>
    %c0_1 = arith.constant 0 : index
    %c0_2 = arith.constant 0 : index
    %c0_3 = arith.constant 0 : index
    %1 = vector.load %arg2[%c0_1, %c0_2, %c0_3] : memref<2x4x64xf32, #tpu.memory_space<vmem>>, vector<1x4x64xf32>
    %2 = vector.shape_cast %1 : vector<1x4x64xf32> to vector<4x64xf32>
    %cst = arith.constant dense<0.000000e+00> : vector<4x256xf32>
    %3 = tpu.matmul %2, %0, %cst {dimension_numbers = #tpu.dot_dimension_numbers<[1], [0], [0], [1], [0, 0, 1, 1], [], []>} : vector<4x64xf32>, vector<64x256xf32>, vector<4x256xf32> -> vector<4x256xf32>
    %c0_4 = arith.constant 0 : index
    %c0_5 = arith.constant 0 : index
    %c0_6 = arith.constant 0 : index
    %4 = vector.load %arg3[%c0_4, %c0_5, %c0_6] : memref<2x1x256xf32, #tpu.memory_space<vmem>>, vector<1x1x256xf32>
    %5 = vector.shape_cast %4 : vector<1x1x256xf32> to vector<1x256xf32>
    %6 = vector.broadcast %5 : vector<1x256xf32> to vector<4x256xf32>
    %7 = arith.addf %3, %6 : vector<4x256xf32>
    %8 = vector.extract_strided_slice %7 {offsets = [0, 0], sizes = [4, 128], strides = [1, 1]} : vector<4x256xf32> to vector<4x128xf32>
    %9 = math.tanh %8 : vector<4x128xf32>
    %10 = vector.extract_strided_slice %7 {offsets = [0, 128], sizes = [4, 128], strides = [1, 1]} : vector<4x256xf32> to vector<4x128xf32>
    %11 = arith.negf %10 : vector<4x128xf32>
    %12 = math.exp %11 : vector<4x128xf32>
    %cst_7 = arith.constant 1.000000e+00 : f32
    %13 = vector.broadcast %cst_7 : f32 to vector<4x128xf32>
    %14 = arith.addf %13, %12 : vector<4x128xf32>
    %15 = arith.divf %13, %14 : vector<4x128xf32>
    %16 = arith.mulf %9, %15 : vector<4x128xf32>
    %c0_8 = arith.constant 0 : index
    %c0_9 = arith.constant 0 : index
    %c0_10 = arith.constant 0 : index
    %17 = vector.load %arg5[%c0_8, %c0_9, %c0_10] : memref<2x4x128xf32, #tpu.memory_space<vmem>>, vector<1x4x128xf32>
    %18 = vector.shape_cast %17 : vector<1x4x128xf32> to vector<4x128xf32>
    %19 = vector.shape_cast %16 : vector<4x128xf32> to vector<1x4x128xf32>
    tpu.vector_store %arg5[%c0_8, %c0_9, %c0_10], %19 {strides = array<i32>} : memref<2x4x128xf32, #tpu.memory_space<vmem>>, vector<1x4x128xf32>,
    %c1 = arith.constant 1 : index
    %c0_11 = arith.constant 0 : index
    %c0_12 = arith.constant 0 : index
    %20 = vector.load %arg2[%c1, %c0_11, %c0_12] : memref<2x4x64xf32, #tpu.memory_space<vmem>>, vector<1x4x64xf32>
    %21 = vector.shape_cast %20 : vector<1x4x64xf32> to vector<4x64xf32>
    %cst_13 = arith.constant dense<0.000000e+00> : vector<4x256xf32>
    %22 = tpu.matmul %21, %0, %cst_13 {dimension_numbers = #tpu.dot_dimension_numbers<[1], [0], [0], [1], [0, 0, 1, 1], [], []>} : vector<4x64xf32>, vector<64x256xf32>, vector<4x256xf32> -> vector<4x256xf32>
    %c1_14 = arith.constant 1 : index
    %c0_15 = arith.constant 0 : index
    %c0_16 = arith.constant 0 : index
    %23 = vector.load %arg3[%c1_14, %c0_15, %c0_16] : memref<2x1x256xf32, #tpu.memory_space<vmem>>, vector<1x1x256xf32>
    %24 = vector.shape_cast %23 : vector<1x1x256xf32> to vector<1x256xf32>
    %25 = vector.broadcast %24 : vector<1x256xf32> to vector<4x256xf32>
    %26 = arith.addf %22, %25 : vector<4x256xf32>
    %27 = vector.extract_strided_slice %26 {offsets = [0, 0], sizes = [4, 128], strides = [1, 1]} : vector<4x256xf32> to vector<4x128xf32>
    %28 = math.tanh %27 : vector<4x128xf32>
    %29 = vector.extract_strided_slice %26 {offsets = [0, 128], sizes = [4, 128], strides = [1, 1]} : vector<4x256xf32> to vector<4x128xf32>
    %30 = arith.negf %29 : vector<4x128xf32>
    %31 = math.exp %30 : vector<4x128xf32>
    %cst_17 = arith.constant 1.000000e+00 : f32
    %32 = vector.broadcast %cst_17 : f32 to vector<4x128xf32>
    %33 = arith.addf %32, %31 : vector<4x128xf32>
    %34 = arith.divf %32, %33 : vector<4x128xf32>
    %35 = arith.mulf %28, %34 : vector<4x128xf32>
    %c1_18 = arith.constant 1 : index
    %c0_19 = arith.constant 0 : index
    %c0_20 = arith.constant 0 : index
    %36 = vector.load %arg5[%c1_18, %c0_19, %c0_20] : memref<2x4x128xf32, #tpu.memory_space<vmem>>, vector<1x4x128xf32>
    %37 = vector.shape_cast %36 : vector<1x4x128xf32> to vector<4x128xf32>
    %38 = vector.shape_cast %35 : vector<4x128xf32> to vector<1x4x128xf32>
    tpu.vector_store %arg5[%c1_18, %c0_19, %c0_20], %38 {strides = array<i32>} : memref<2x4x128xf32, #tpu.memory_space<vmem>>, vector<1x4x128xf32>,
    return
  }
  func.func @transform_0(%arg0: i32, %arg1: i32) -> (i32, i32, i32) {
    %c0_i32 = arith.constant 0 : i32
    %c0_i32_0 = arith.constant 0 : i32
    return %arg0, %arg1, %c0_i32 : i32, i32, i32
  }
  func.func @transform_1(%arg0: i32, %arg1: i32) -> (i32, i32, i32) {
    %c0_i32 = arith.constant 0 : i32
    %c0_i32_0 = arith.constant 0 : i32
    %c0_i32_1 = arith.constant 0 : i32
    return %arg0, %c0_i32, %c0_i32_0 : i32, i32, i32
  }
  func.func @transform_2(%arg0: i32, %arg1: i32) -> (i32, i32) {
    %c0_i32 = arith.constant 0 : i32
    %c0_i32_0 = arith.constant 0 : i32
    %c0_i32_1 = arith.constant 0 : i32
    return %c0_i32, %c0_i32_0 : i32, i32
  }
  func.func @transform_3(%arg0: i32, %arg1: i32) -> (i32, i32, i32) {
    %c0_i32 = arith.constant 0 : i32
    %c0_i32_0 = arith.constant 0 : i32
    return %arg0, %arg1, %c0_i32 : i32, i32, i32
  }
}

</mosaic_0001>

<llo_original>
// kernel: tile.14
$region0: #{tile.14}
  %s0 = inlined_call_operand.vmem [shape: f32[2,2,64], index: 0, kind: input, shape index: {}]
  %s1 = inlined_call_operand.vmem [shape: f32[2,128], index: 1, kind: output, shape index: {}]
  $region1: #{tile.14} parent=0
    #allocation0 [shape = 'u8[4096]{0}', space=vmem, size = 0x1000, scoped, tag = 'scoped mem for output reshape']
    #allocation1 [shape = 'u8[8192]{0}', space=vmem, size = 0x2000, scoped, tag = 'scoped mem for input reshape']
    %s3 = sshll.u32 1, 2
    %s4 = ssub.s32 %s3, 1
    %s5 = scalar_lea.vmem %s0, 2
    %v6 = vld [vmem:[%s5] sm:%s4]
    %s7 = scalar_lea.vmem [#allocation1], 8
    %8 = vst [vmem:[%s7] sm:%s4] %v6
    %v9 = vld [vmem:[%s0] sm:%s4]
    %10 = vst [vmem:[#allocation1] sm:%s4] %v9
    %s11 = smov 3
    %v12 = vld [vmem:[#allocation1] ss:$8 sm:%s11]
    %vm13 = vcmask 523264
    %14 = vst.msk [vmem:[#allocation0] sm:$0x3] %vm13, %v12
    %s15 = scalar_lea.vmem [#allocation1], 1
    %s16 = smov 3
    %v17 = vld [vmem:[%s15] ss:$8 sm:%s16]
    %18 = vrot.lane.b32.xlu0 %v17, 64
    %v19 = vpop.permute.xlu0 %18
    %vm20 = vcmask 1048064
    %21 = vst.msk [vmem:[#allocation0] sm:$0x3] %vm20, %v19
    %s23 = sshll.u32 1, 2
    %s24 = ssub.s32 %s23, 1
    %v26 = vld [vmem:[#allocation0] sm:%s24]
    %s27 = sshll.u32 1, 2
    %s28 = ssub.s32 %s27, 1
    %29 = vst [vmem:[%s1] sm:%s28] %v26

// kernel: gtu_scoring.1
$region0: #{gtu_scoring.1}
  #allocation0 [shape = 'u32[]', space=smem, size = 0x4, offset = 0x4, fixed_abs, tag = 'smem constant byte address 0x4 - core index']
  #allocation1 [shape = 'u32[144,128]{1,0:T(1,128)}', space=vmem, size = 0x12000, scoped, tag = 'internal scratch']
  %s0 = inlined_call_operand.vmem [shape: f32[2,4,64], index: 0, kind: input, shape index: {}]
  %s1 = inlined_call_operand.vmem [shape: f32[2,1,256], index: 1, kind: input, shape index: {}]
  %s2 = inlined_call_operand.vmem [shape: f32[64,256], index: 2, kind: input, shape index: {}]
  %s3 = inlined_call_operand.vmem [shape: f32[2,4,128], index: 3, kind: output, shape index: {}]
  %s4 = sld [smem:[#allocation0]]
  $region22: #{gtu_scoring.1} parent=0
    _
  %s6 = ssub.s32 1, %s4
  %s7 = scalar_select 0, %s6, %s4
  // Predicated region
  $region2: #{gtu_scoring.1} parent=0 // pred_check
    _
  $region3: #{gtu_scoring.1} parent=0 // pred_check_branch
    %9 = sbr.rel (0) target = $region5
  $region4: #{gtu_scoring.1} parent=0 // pred_region
    _
  $region5: #{gtu_scoring.1} parent=0 // pred_fallthru
    _
  // Predicated region
  $region6: #{gtu_scoring.1} parent=0 // pred_check
    _
  $region7: #{gtu_scoring.1} parent=0 // pred_check_branch
    %11 = sbr.rel (0) target = $region9
  $region8: #{gtu_scoring.1} parent=0 // pred_region
    _
  $region9: #{gtu_scoring.1} parent=0 // pred_fallthru
    _
  // Predicated region
  $region10: #{gtu_scoring.1} parent=0 // pred_check
    _
  $region11: #{gtu_scoring.1} parent=0 // pred_check_branch
    %13 = sbr.rel (0) target = $region13
  $region12: #{gtu_scoring.1} parent=0 // pred_region
    _
  $region13: #{gtu_scoring.1} parent=0 // pred_fallthru
    _
  %v14 = vld [vmem:[%s2] sm:$0xff]
  %v15 = vld [vmem:[%s2 + $0x8] sm:$0xff]
  %v16 = vld [vmem:[%s2 + $0x10] sm:$0xff]
  %v17 = vld [vmem:[%s2 + $0x18] sm:$0xff]
  %v18 = vld [vmem:[%s2 + $0x20] sm:$0xff]
  %v19 = vld [vmem:[%s2 + $0x28] sm:$0xff]
  %v20 = vld [vmem:[%s2 + $0x30] sm:$0xff]
  %v21 = vld [vmem:[%s2 + $0x38] sm:$0xff]
  %v22 = vld [vmem:[%s2 + $0x40] sm:$0xff]
  %v23 = vld [vmem:[%s2 + $0x48] sm:$0xff]
  %v24 = vld [vmem:[%s2 + $0x50] sm:$0xff]
  %v25 = vld [vmem:[%s2 + $0x58] sm:$0xff]
  %v26 = vld [vmem:[%s2 + $0x60] sm:$0xff]
  %v27 = vld [vmem:[%s2 + $0x68] sm:$0xff]
  %v28 = vld [vmem:[%s2 + $0x70] sm:$0xff]
  %v29 = vld [vmem:[%s2 + $0x78] sm:$0xff]
  %v30 = vld [vmem:[%s0] sm:$0xf]
  %v31 = vld [vmem:[%s1] sm:$0x3]
  %v33 = vlaneseq
  %v34 = vshrl.u32 %v33, 7
  %v35 = vsub.s32 0, %v34
  %v36 = vrot.slane %v31, %v35
  %v37 = vlaneseq
  %v38 = vshrl.u32 %v37, 7
  %v39 = vsub.s32 1, %v38
  %v40 = vrot.slane %v31, %v39
  %vm43 = vcmask 523264
  %v45 = vsel %vm43, %v30, 0
  %47 = vmatprep.subr.mxu0 0.0
  %48 = vmatpush1.msra.mxu0 0.0
  %49 = vmatprep.subr.mxu0 0.0
  %50 = vmatpush1.msra.mxu0 0.0
  %51 = vmatprep.subr.mxu0 0.0
  %52 = vmatpush1.msra.mxu0 0.0
  %53 = vmatprep.subr.mxu0 0.0
  %54 = vmatpush1.msra.mxu0 0.0
  %55 = vmatprep.subr.mxu0 0.0
  %56 = vmatpush1.msra.mxu0 0.0
  %57 = vmatprep.subr.mxu0 0.0
  %58 = vmatpush1.msra.mxu0 0.0
  %59 = vmatprep.subr.mxu0 0.0
  %60 = vmatpush1.msra.mxu0 0.0
  %61 = vmatprep.subr.mxu0 0.0
  %62 = vmatpush1.msra.mxu0 0.0
  %63 = vmatprep.subr.mxu0 %v29
  %64 = vmatpush1.msra.mxu0 %v28
  %65 = vmatprep.subr.mxu0 %v27
  %66 = vmatpush1.msra.mxu0 %v26
  %67 = vmatprep.subr.mxu0 %v25
  %68 = vmatpush1.msra.mxu0 %v24
  %69 = vmatprep.subr.mxu0 %v23
  %70 = vmatpush1.msra.mxu0 %v22
  %71 = vmatprep.subr.mxu0 %v21
  %72 = vmatpush1.msra.mxu0 %v20
  %73 = vmatprep.subr.mxu0 %v19
  %74 = vmatpush1.msra.mxu0 %v18
  %75 = vmatprep.subr.mxu0 %v17
  %76 = vmatpush1.msra.mxu0 %v16
  %77 = vmatprep.subr.mxu0 %v15
  %78 = vmatpush1.msra.mxu0 %v14
  %79 = vmatprep.subr.mxu0 0.0
  %80 = vmatpush2.msra.mxu0 0.0
  %81 = vmatprep.subr.mxu0 0.0
  %82 = vmatpush2.msra.mxu0 0.0
  %83 = vmatprep.subr.mxu0 0.0
  %84 = vmatpush2.msra.mxu0 0.0
  %85 = vmatprep.subr.mxu0 0.0
  %86 = vmatpush2.msra.mxu0 0.0
  %87 = vmatprep.subr.mxu0 0.0
  %88 = vmatpush2.msra.mxu0 0.0
  %89 = vmatprep.subr.mxu0 0.0
  %90 = vmatpush2.msra.mxu0 0.0
  %91 = vmatprep.subr.mxu0 0.0
  %92 = vmatpush2.msra.mxu0 0.0
  %93 = vmatprep.subr.mxu0 0.0
  %94 = vmatpush2.msra.mxu0 0.0
  %95 = vmatprep.subr.mxu0 0.0
  %96 = vmatpush2.msra.mxu0 0.0
  %97 = vmatprep.subr.mxu0 0.0
  %98 = vmatpush2.msra.mxu0 0.0
  %99 = vmatprep.subr.mxu0 0.0
  %100 = vmatpush2.msra.mxu0 0.0
  %101 = vmatprep.subr.mxu0 0.0
  %102 = vmatpush2.msra.mxu0 0.0
  %103 = vmatprep.subr.mxu0 0.0
  %104 = vmatpush2.msra.mxu0 0.0
  %105 = vmatprep.subr.mxu0 0.0
  %106 = vmatpush2.msra.mxu0 0.0
  %107 = vmatprep.subr.mxu0 0.0
  %108 = vmatpush2.msra.mxu0 0.0
  %109 = vmatprep.subr.mxu0 0.0
  %110 = vmatpush2.msra.mxu0 0.0
  %111 = vmatprep.mubr.f32.mxu0 0.0
  %112 = vmatmul.mubr.f32.gmra.mxu0 %v45
  %v113 = vpop.f32.mrf.mxu0
  %v114 = vadd.f32 %v36, %v113
  %v115 = vpop.f32.mrf.mxu0
  %v116 = vadd.f32 %v40, %v115
  %117 = vdwg.mxu0
  %v118 = vtanh.pop %v114
  %v119 = vxor.u32 %v116, 2147483648
  %v120 = vmul.f32 %v119, 1.442695
  %v121 = vpow.pop %v120
  %v122 = vadd.f32 %v121, 1.0
  %v123 = vrcp.pop %v122
  %v124 = vmul.f32 1.0, %v123
  %v125 = vmul.f32 %v118, %v124
  %126 = vst [vmem:[%s3] sm:$0xf] %v125
  %s127 = scalar_lea.vmem %s0, 4
  %v128 = vld [vmem:[%s127] sm:$0xf]
  %s129 = scalar_lea.vmem %s1, 2
  %v130 = vld [vmem:[%s129] sm:$0x3]
  %v132 = vlaneseq
  %v133 = vshrl.u32 %v132, 7
  %v134 = vsub.s32 0, %v133
  %v135 = vrot.slane %v130, %v134
  %v136 = vlaneseq
  %v137 = vshrl.u32 %v136, 7
  %v138 = vsub.s32 1, %v137
  %v139 = vrot.slane %v130, %v138
  %v143 = vsel %vm43, %v128, 0
  %145 = vmatprep.subr.mxu0 0.0
  %146 = vmatpush1.msra.mxu0 0.0
  %147 = vmatprep.subr.mxu0 0.0
  %148 = vmatpush1.msra.mxu0 0.0
  %149 = vmatprep.subr.mxu0 0.0
  %150 = vmatpush1.msra.mxu0 0.0
  %151 = vmatprep.subr.mxu0 0.0
  %152 = vmatpush1.msra.mxu0 0.0
  %153 = vmatprep.subr.mxu0 0.0
  %154 = vmatpush1.msra.mxu0 0.0
  %155 = vmatprep.subr.mxu0 0.0
  %156 = vmatpush1.msra.mxu0 0.0
  %157 = vmatprep.subr.mxu0 0.0
  %158 = vmatpush1.msra.mxu0 0.0
  %159 = vmatprep.subr.mxu0 0.0
  %160 = vmatpush1.msra.mxu0 0.0
  %161 = vmatprep.subr.mxu0 %v29
  %162 = vmatpush1.msra.mxu0 %v28
  %163 = vmatprep.subr.mxu0 %v27
  %164 = vmatpush1.msra.mxu0 %v26
  %165 = vmatprep.subr.mxu0 %v25
  %166 = vmatpush1.msra.mxu0 %v24
  %167 = vmatprep.subr.mxu0 %v23
  %168 = vmatpush1.msra.mxu0 %v22
  %169 = vmatprep.subr.mxu0 %v21
  %170 = vmatpush1.msra.mxu0 %v20
  %171 = vmatprep.subr.mxu0 %v19
  %172 = vmatpush1.msra.mxu0 %v18
  %173 = vmatprep.subr.mxu0 %v17
  %174 = vmatpush1.msra.mxu0 %v16
  %175 = vmatprep.subr.mxu0 %v15
  %176 = vmatpush1.msra.mxu0 %v14
  %177 = vmatprep.subr.mxu0 0.0
  %178 = vmatpush2.msra.mxu0 0.0
  %179 = vmatprep.subr.mxu0 0.0
  %180 = vmatpush2.msra.mxu0 0.0
  %181 = vmatprep.subr.mxu0 0.0
  %182 = vmatpush2.msra.mxu0 0.0
  %183 = vmatprep.subr.mxu0 0.0
  %184 = vmatpush2.msra.mxu0 0.0
  %185 = vmatprep.subr.mxu0 0.0
  %186 = vmatpush2.msra.mxu0 0.0
  %187 = vmatprep.subr.mxu0 0.0
  %188 = vmatpush2.msra.mxu0 0.0
  %189 = vmatprep.subr.mxu0 0.0
  %190 = vmatpush2.msra.mxu0 0.0
  %191 = vmatprep.subr.mxu0 0.0
  %192 = vmatpush2.msra.mxu0 0.0
  %193 = vmatprep.subr.mxu0 0.0
  %194 = vmatpush2.msra.mxu0 0.0
  %195 = vmatprep.subr.mxu0 0.0
  %196 = vmatpush2.msra.mxu0 0.0
  %197 = vmatprep.subr.mxu0 0.0
  %198 = vmatpush2.msra.mxu0 0.0
  %199 = vmatprep.subr.mxu0 0.0
  %200 = vmatpush2.msra.mxu0 0.0
  %201 = vmatprep.subr.mxu0 0.0
  %202 = vmatpush2.msra.mxu0 0.0
  %203 = vmatprep.subr.mxu0 0.0
  %204 = vmatpush2.msra.mxu0 0.0
  %205 = vmatprep.subr.mxu0 0.0
  %206 = vmatpush2.msra.mxu0 0.0
  %207 = vmatprep.subr.mxu0 0.0
  %208 = vmatpush2.msra.mxu0 0.0
  %209 = vmatprep.mubr.f32.mxu0 0.0
  %210 = vmatmul.mubr.f32.gmra.mxu0 %v143
  %v211 = vpop.f32.mrf.mxu0
  %v212 = vadd.f32 %v135, %v211
  %v213 = vpop.f32.mrf.mxu0
  %v214 = vadd.f32 %v139, %v213
  %215 = vdwg.mxu0
  %v216 = vtanh.pop %v212
  %v217 = vxor.u32 %v214, 2147483648
  %v218 = vmul.f32 %v217, 1.442695
  %v219 = vpow.pop %v218
  %v220 = vadd.f32 %v219, 1.0
  %v221 = vrcp.pop %v220
  %v222 = vmul.f32 1.0, %v221
  %v223 = vmul.f32 %v216, %v222
  %s224 = scalar_lea.vmem %s3, 4
  %225 = vst [vmem:[%s224] sm:$0xf] %v223
  // Predicated region
  $region14: #{gtu_scoring.1} parent=0 // pred_check
    _
  $region15: #{gtu_scoring.1} parent=0 // pred_check_branch
    %227 = sbr.rel (0) target = $region17
  $region16: #{gtu_scoring.1} parent=0 // pred_region
    _
  $region17: #{gtu_scoring.1} parent=0 // pred_fallthru
    _
  // Predicated region
  $region18: #{gtu_scoring.1} parent=0 // pred_check
    _
  $region19: #{gtu_scoring.1} parent=0 // pred_check_branch
    %229 = sbr.rel (0) target = $region21
  $region20: #{gtu_scoring.1} parent=0 // pred_region
    _
  $region21: #{gtu_scoring.1} parent=0 // pred_fallthru
    _

</llo_original>
